<compile_context>
chip_gen: v7x
topology: tpu7x:2x2x1
jax: 0.10.0
libtpu: 0.0.40
codegen_flags: <defaults>
</compile_context>

<pallas_src>
import math

import jax
import jax.numpy as jnp
from jax.experimental import pallas as pl
from jax.experimental.pallas import tpu as pltpu


# Layer dims in PyTorch-native (out_features, in_features) order.
_LAYER_DIMS = ((10, 4), (20, 10), (10, 20), (5, 10), (1, 5))
# Row offset (multiple of 8) of each layer inside the packed parameter buffers.
_ROW_OFFSETS = (0, 16, 40, 56, 64)
_PACKED_ROWS = 72          # last layer ends at 65, padded up to a multiple of 8
_MAX_IN = 20               # widest in_features


def _policy_kernel(wp_ref, bp_ref, x_ref, out_ref):
    # x_ref: (4, TB) — feature-major, batch rides the 128-lane axis.
    h = x_ref[...]
    n_layers = len(_LAYER_DIMS)
    for li, ((out_f, in_f), off) in enumerate(zip(_LAYER_DIMS, _ROW_OFFSETS)):
        w = wp_ref[off:off + out_f, 0:in_f]          # (out_f, in_f), static slice
        b = bp_ref[off:off + out_f, :]               # (out_f, 1) broadcast over lanes
        h = jnp.dot(w, h, preferred_element_type=jnp.float32) + b
        if li < n_layers - 1:
            h = jnp.maximum(h, 0.0)                  # ReLU
    # Sigmoid: exp and approximate reciprocal both go to the (idle) EUP slot.
    prob = pl.reciprocal(1.0 + jnp.exp(-h), approx=True)
    out_ref[...] = jnp.clip(prob, 0.0, 1.0)          # keep the [0, 1] guarantee


def _round_up(x, m):
    return (x + m - 1) // m * m


def _pack_params(params):
    """Pack all weights/biases into one weight slab + one bias column."""
    wp = jnp.zeros((_PACKED_ROWS, _MAX_IN), jnp.float32)
    bp = jnp.zeros((_PACKED_ROWS, 1), jnp.float32)
    for i, ((out_f, in_f), off) in enumerate(zip(_LAYER_DIMS, _ROW_OFFSETS), start=1):
        wp = wp.at[off:off + out_f, 0:in_f].set(params[f"w{i}"].astype(jnp.float32))
        bp = bp.at[off:off + out_f, 0].set(params[f"b{i}"].astype(jnp.float32))
    return wp, bp


@jax.jit
def policy_forward(observation, params):
    """observation: (B, 4) float32 -> (B, 1) probabilities in [0, 1]."""
    B = observation.shape[0]
    TB = min(1024, _round_up(B, 128))        # lane tile (multiple of 128)
    B_pad = _round_up(B, TB)

    wp, bp = _pack_params(params)

    # Layout plumbing in the wrapper: feature-major + lane padding.
    x = jnp.transpose(observation.astype(jnp.float32))        # (4, B)
    x = jnp.pad(x, ((0, 0), (0, B_pad - B)))                   # (4, B_pad)

    out = pl.pallas_call(
        _policy_kernel,
        out_shape=jax.ShapeDtypeStruct((1, B_pad), jnp.float32),
        grid=(B_pad // TB,),
        in_specs=[
            pl.BlockSpec((_PACKED_ROWS, _MAX_IN), lambda i: (0, 0)),  # weights (resident)
            pl.BlockSpec((_PACKED_ROWS, 1), lambda i: (0, 0)),        # biases  (resident)
            pl.BlockSpec((4, TB), lambda i: (0, i)),                  # streamed batch tile
        ],
        out_specs=pl.BlockSpec((1, TB), lambda i: (0, i)),
        compiler_params=pltpu.CompilerParams(
            dimension_semantics=("parallel",)),
    )(wp, bp, x)

    return out[:, :B].reshape(B, 1)


def init_params(key):
    """Mimic PyTorch nn.Linear defaults: U(-1/sqrt(fan_in), 1/sqrt(fan_in)).
    Weights are stored PyTorch-native as (out_features, in_features)."""
    params = {}
    for i, (fan_out, fan_in) in enumerate(_LAYER_DIMS, start=1):
        key, kw, kb = jax.random.split(key, 3)
        bound = 1.0 / math.sqrt(fan_in)
        params[f"w{i}"] = jax.random.uniform(
            kw, (fan_out, fan_in), jnp.float32, minval=-bound, maxval=bound)
        params[f"b{i}"] = jax.random.uniform(
            kb, (fan_out,), jnp.float32, minval=-bound, maxval=bound)
    return params


def reference_forward(observation, params):
    h = observation
    for i in range(1, 5):
        h = jnp.maximum(h @ params[f"w{i}"].T + params[f"b{i}"], 0.0)
    logit = h @ params["w5"].T + params["b5"]
    return jax.nn.sigmoid(logit)


if __name__ == "__main__":
    key = jax.random.PRNGKey(0)
    key, pkey, xkey, xkey2 = jax.random.split(key, 4)

    params = init_params(pkey)

    # CartPole observations: 4 features. Small batch of 8 rows.
    B = 8
    observation = jax.random.normal(xkey, (B, 4), dtype=jnp.float32)

    prob = policy_forward(observation, params)
    prob = jax.block_until_ready(prob)

    assert prob.shape == (B, 1), prob.shape
    # Mirror the module's assertion: prob must lie in [0, 1].
    assert bool(jnp.all((prob >= 0.0) & (prob <= 1.0))), (
        "prob should fall inside [0, 1], got: {}".format(prob))

    ref = reference_forward(observation, params)
    # approx reciprocal in the in-kernel sigmoid -> slightly relaxed tolerance.
    assert jnp.allclose(prob, ref, atol=5e-3, rtol=0.0), (prob, ref)

    # Second check exercising a multi-step batch grid (grid > 1).
    B2 = 2500
    observation2 = jax.random.normal(xkey2, (B2, 4), dtype=jnp.float32)
    prob2 = jax.block_until_ready(policy_forward(observation2, params))
    ref2 = reference_forward(observation2, params)
    assert prob2.shape == (B2, 1)
    assert bool(jnp.all((prob2 >= 0.0) & (prob2 <= 1.0)))
    assert jnp.allclose(prob2, ref2, atol=5e-3, rtol=0.0)

    print("KERNEL_OK")
</pallas_src>

<mosaic_0001>
module attributes {stable_mosaic.version = 11 : i64} {
  func.func @_policy_kernel(%arg0: i32, %arg1: memref<72x20xf32, #tpu.memory_space<vmem>>, %arg2: memref<72x1xf32, #tpu.memory_space<vmem>>, %arg3: memref<4x128xf32, #tpu.memory_space<vmem>>, %arg4: memref<1x128xf32, #tpu.memory_space<vmem>>) attributes {dimension_semantics = [#tpu.dimension_semantics<parallel>], iteration_bounds = array<i64: 1>, scalar_prefetch = 0 : i64, scratch_operands = 0 : i64, tpu.core_type = #tpu.core_type<tc>, window_params = [{pipeline_mode = #tpu.pipeline_mode<synchronous>, transform_indices = @transform_0, window_bounds = array<i64: 72, 20>}, {pipeline_mode = #tpu.pipeline_mode<synchronous>, transform_indices = @transform_1, window_bounds = array<i64: 72, 1>}, {transform_indices = @transform_2, window_bounds = array<i64: 4, 128>}, {transform_indices = @transform_3, window_bounds = array<i64: 1, 128>}]} {
    %c0 = arith.constant 0 : index
    %c0_0 = arith.constant 0 : index
    %0 = vector.load %arg3[%c0, %c0_0] : memref<4x128xf32, #tpu.memory_space<vmem>>, vector<4x128xf32>
    %c0_1 = arith.constant 0 : index
    %c0_2 = arith.constant 0 : index
    %1 = vector.load %arg1[%c0_1, %c0_2] : memref<72x20xf32, #tpu.memory_space<vmem>>, vector<10x4xf32>
    %c0_3 = arith.constant 0 : index
    %c0_4 = arith.constant 0 : index
    %2 = vector.load %arg2[%c0_3, %c0_4] : memref<72x1xf32, #tpu.memory_space<vmem>>, vector<10x1xf32>
    %cst = arith.constant dense<0.000000e+00> : vector<10x128xf32>
    %3 = tpu.matmul %1, %0, %cst {dimension_numbers = #tpu.dot_dimension_numbers<[1], [0], [0], [1], [0, 0, 1, 1], [], []>} : vector<10x4xf32>, vector<4x128xf32>, vector<10x128xf32> -> vector<10x128xf32>
    %4 = vector.broadcast %2 : vector<10x1xf32> to vector<10x128xf32>
    %5 = arith.addf %3, %4 : vector<10x128xf32>
    %cst_5 = arith.constant 0.000000e+00 : f32
    %6 = vector.broadcast %cst_5 : f32 to vector<10x128xf32>
    %7 = arith.maximumf %5, %6 : vector<10x128xf32>
    %c16 = arith.constant 16 : index
    %c0_6 = arith.constant 0 : index
    %8 = vector.load %arg1[%c16, %c0_6] : memref<72x20xf32, #tpu.memory_space<vmem>>, vector<20x10xf32>
    %c16_7 = arith.constant 16 : index
    %c0_8 = arith.constant 0 : index
    %9 = vector.load %arg2[%c16_7, %c0_8] : memref<72x1xf32, #tpu.memory_space<vmem>>, vector<20x1xf32>
    %cst_9 = arith.constant dense<0.000000e+00> : vector<20x128xf32>
    %10 = tpu.matmul %8, %7, %cst_9 {dimension_numbers = #tpu.dot_dimension_numbers<[1], [0], [0], [1], [0, 0, 1, 1], [], []>} : vector<20x10xf32>, vector<10x128xf32>, vector<20x128xf32> -> vector<20x128xf32>
    %11 = vector.broadcast %9 : vector<20x1xf32> to vector<20x128xf32>
    %12 = arith.addf %10, %11 : vector<20x128xf32>
    %cst_10 = arith.constant 0.000000e+00 : f32
    %13 = vector.broadcast %cst_10 : f32 to vector<20x128xf32>
    %14 = arith.maximumf %12, %13 : vector<20x128xf32>
    %c40 = arith.constant 40 : index
    %c0_11 = arith.constant 0 : index
    %15 = vector.load %arg1[%c40, %c0_11] : memref<72x20xf32, #tpu.memory_space<vmem>>, vector<10x20xf32>
    %c40_12 = arith.constant 40 : index
    %c0_13 = arith.constant 0 : index
    %16 = vector.load %arg2[%c40_12, %c0_13] : memref<72x1xf32, #tpu.memory_space<vmem>>, vector<10x1xf32>
    %cst_14 = arith.constant dense<0.000000e+00> : vector<10x128xf32>
    %17 = tpu.matmul %15, %14, %cst_14 {dimension_numbers = #tpu.dot_dimension_numbers<[1], [0], [0], [1], [0, 0, 1, 1], [], []>} : vector<10x20xf32>, vector<20x128xf32>, vector<10x128xf32> -> vector<10x128xf32>
    %18 = vector.broadcast %16 : vector<10x1xf32> to vector<10x128xf32>
    %19 = arith.addf %17, %18 : vector<10x128xf32>
    %cst_15 = arith.constant 0.000000e+00 : f32
    %20 = vector.broadcast %cst_15 : f32 to vector<10x128xf32>
    %21 = arith.maximumf %19, %20 : vector<10x128xf32>
    %c56 = arith.constant 56 : index
    %c0_16 = arith.constant 0 : index
    %22 = vector.load %arg1[%c56, %c0_16] : memref<72x20xf32, #tpu.memory_space<vmem>>, vector<5x10xf32>
    %c56_17 = arith.constant 56 : index
    %c0_18 = arith.constant 0 : index
    %23 = vector.load %arg2[%c56_17, %c0_18] : memref<72x1xf32, #tpu.memory_space<vmem>>, vector<5x1xf32>
    %cst_19 = arith.constant dense<0.000000e+00> : vector<5x128xf32>
    %24 = tpu.matmul %22, %21, %cst_19 {dimension_numbers = #tpu.dot_dimension_numbers<[1], [0], [0], [1], [0, 0, 1, 1], [], []>} : vector<5x10xf32>, vector<10x128xf32>, vector<5x128xf32> -> vector<5x128xf32>
    %25 = vector.broadcast %23 : vector<5x1xf32> to vector<5x128xf32>
    %26 = arith.addf %24, %25 : vector<5x128xf32>
    %cst_20 = arith.constant 0.000000e+00 : f32
    %27 = vector.broadcast %cst_20 : f32 to vector<5x128xf32>
    %28 = arith.maximumf %26, %27 : vector<5x128xf32>
    %c64 = arith.constant 64 : index
    %c0_21 = arith.constant 0 : index
    %29 = vector.load %arg1[%c64, %c0_21] : memref<72x20xf32, #tpu.memory_space<vmem>>, vector<1x5xf32>
    %c64_22 = arith.constant 64 : index
    %c0_23 = arith.constant 0 : index
    %30 = vector.load %arg2[%c64_22, %c0_23] : memref<72x1xf32, #tpu.memory_space<vmem>>, vector<1x1xf32>
    %cst_24 = arith.constant dense<0.000000e+00> : vector<1x128xf32>
    %31 = tpu.matmul %29, %28, %cst_24 {dimension_numbers = #tpu.dot_dimension_numbers<[1], [0], [0], [1], [0, 0, 1, 1], [], []>} : vector<1x5xf32>, vector<5x128xf32>, vector<1x128xf32> -> vector<1x128xf32>
    %32 = vector.broadcast %30 : vector<1x1xf32> to vector<1x128xf32>
    %33 = arith.addf %31, %32 : vector<1x128xf32>
    %cst_25 = arith.constant 0.000000e+00 : f32
    %34 = vector.broadcast %cst_25 : f32 to vector<1x128xf32>
    %35 = arith.subf %34, %33 : vector<1x128xf32>
    %36 = math.exp %35 : vector<1x128xf32>
    %cst_26 = arith.constant 1.000000e+00 : f32
    %37 = vector.broadcast %cst_26 : f32 to vector<1x128xf32>
    %38 = arith.addf %37, %36 : vector<1x128xf32>
    %39 = tpu.reciprocal %38 {approx = true} : vector<1x128xf32> -> vector<1x128xf32>
    %cst_27 = arith.constant 0.000000e+00 : f32
    %cst_28 = arith.constant 1.000000e+00 : f32
    %40 = vector.broadcast %cst_27 : f32 to vector<1x128xf32>
    %41 = arith.maximumf %40, %39 : vector<1x128xf32>
    %42 = vector.broadcast %cst_28 : f32 to vector<1x128xf32>
    %43 = arith.minimumf %42, %41 : vector<1x128xf32>
    %c0_29 = arith.constant 0 : index
    %c0_30 = arith.constant 0 : index
    %44 = vector.load %arg4[%c0_29, %c0_30] : memref<1x128xf32, #tpu.memory_space<vmem>>, vector<1x128xf32>
    tpu.vector_store %arg4[%c0_29, %c0_30], %43 {strides = array<i32>} : memref<1x128xf32, #tpu.memory_space<vmem>>, vector<1x128xf32>,
    return
  }
  func.func @transform_0(%arg0: i32) -> (i32, i32) {
    %c0_i32 = arith.constant 0 : i32
    %c0_i32_0 = arith.constant 0 : i32
    %c0_i32_1 = arith.constant 0 : i32
    return %c0_i32, %c0_i32_0 : i32, i32
  }
  func.func @transform_1(%arg0: i32) -> (i32, i32) {
    %c0_i32 = arith.constant 0 : i32
    %c0_i32_0 = arith.constant 0 : i32
    %c0_i32_1 = arith.constant 0 : i32
    return %c0_i32, %c0_i32_0 : i32, i32
  }
  func.func @transform_2(%arg0: i32) -> (i32, i32) {
    %c0_i32 = arith.constant 0 : i32
    %c0_i32_0 = arith.constant 0 : i32
    return %c0_i32, %arg0 : i32, i32
  }
  func.func @transform_3(%arg0: i32) -> (i32, i32) {
    %c0_i32 = arith.constant 0 : i32
    %c0_i32_0 = arith.constant 0 : i32
    return %c0_i32, %arg0 : i32, i32
  }
}

</mosaic_0001>

<llo_original>
// kernel: policy_forward.1
$region0: #{policy_forward.1}
  #allocation0 [shape = 'u32[]', space=smem, size = 0x4, offset = 0x4, fixed_abs, tag = 'smem constant byte address 0x4 - core index']
  #allocation1 [shape = 'u32[144,128]{1,0:T(1,128)}', space=vmem, size = 0x12000, scoped, tag = 'internal scratch']
  %s0 = inlined_call_operand.vmem [shape: f32[72,20], index: 0, kind: input, shape index: {}]
  %s1 = inlined_call_operand.vmem [shape: f32[72,1], index: 1, kind: input, shape index: {}]
  %s2 = inlined_call_operand.vmem [shape: f32[4,128], index: 2, kind: input, shape index: {}]
  %s3 = inlined_call_operand.vmem [shape: f32[1,128], index: 3, kind: output, shape index: {}]
  %s4 = sld [smem:[#allocation0]]
  $region22: #{policy_forward.1} parent=0
    _
  %s6 = ssub.s32 1, %s4
  %s7 = scalar_select 0, %s6, %s4
  // Predicated region
  $region2: #{policy_forward.1} parent=0 // pred_check
    _
  $region3: #{policy_forward.1} parent=0 // pred_check_branch
    %9 = sbr.rel (0) target = $region5
  $region4: #{policy_forward.1} parent=0 // pred_region
    _
  $region5: #{policy_forward.1} parent=0 // pred_fallthru
    _
  // Predicated region
  $region6: #{policy_forward.1} parent=0 // pred_check
    _
  $region7: #{policy_forward.1} parent=0 // pred_check_branch
    %11 = sbr.rel (0) target = $region9
  $region8: #{policy_forward.1} parent=0 // pred_region
    _
  $region9: #{policy_forward.1} parent=0 // pred_fallthru
    _
  // Predicated region
  $region10: #{policy_forward.1} parent=0 // pred_check
    _
  $region11: #{policy_forward.1} parent=0 // pred_check_branch
    %13 = sbr.rel (0) target = $region13
  $region12: #{policy_forward.1} parent=0 // pred_region
    _
  $region13: #{policy_forward.1} parent=0 // pred_fallthru
    _
  %v14 = vld [vmem:[%s2] sm:$0xf]
  %v15 = vld [vmem:[%s0] sm:$0xff]
  %v16 = vld [vmem:[%s0 + $0x8] sm:$0x3]
  %v17 = vld [vmem:[%s1] sm:$0xff]
  %v18 = vld [vmem:[%s1 + $0x8] sm:$0x3]
  %20 = vset.pattern.permute.xlu0 0
  %21 = vperm.xlu0 %20, %v17
  %v22 = vpop.permute.xlu0 %21
  %25 = vset.pattern.permute.xlu0 0
  %26 = vperm.xlu0 %25, %v18
  %v27 = vpop.permute.xlu0 %26
  %vm29 = vcmask 31744
  %v31 = vsel %vm29, %v15, 0
  %v34 = vsel %vm29, %v16, 0
  %vm36 = vcmask 1043456
  %v38 = vsel %vm36, %v14, 0
  %40 = vmatprep.subr.mxu0 0.0
  %41 = vmatpush1.msra.mxu0 %v38
  %42 = vmatprep.subr.mxu0 0.0
  %43 = vmatpush1.msra.mxu0 0.0
  %44 = vmatprep.subr.mxu0 0.0
  %45 = vmatpush1.msra.mxu0 0.0
  %46 = vmatprep.subr.mxu0 0.0
  %47 = vmatpush1.msra.mxu0 0.0
  %48 = vmatprep.subr.mxu0 0.0
  %49 = vmatpush1.msra.mxu0 0.0
  %50 = vmatprep.subr.mxu0 0.0
  %51 = vmatpush1.msra.mxu0 0.0
  %52 = vmatprep.subr.mxu0 0.0
  %53 = vmatpush1.msra.mxu0 0.0
  %54 = vmatprep.subr.mxu0 0.0
  %55 = vmatpush1.msra.mxu0 0.0
  %56 = vmatprep.subr.mxu0 0.0
  %57 = vmatpush1.msra.mxu0 0.0
  %58 = vmatprep.subr.mxu0 0.0
  %59 = vmatpush1.msra.mxu0 0.0
  %60 = vmatprep.subr.mxu0 0.0
  %61 = vmatpush1.msra.mxu0 0.0
  %62 = vmatprep.subr.mxu0 0.0
  %63 = vmatpush1.msra.mxu0 0.0
  %64 = vmatprep.subr.mxu0 0.0
  %65 = vmatpush1.msra.mxu0 0.0
  %66 = vmatprep.subr.mxu0 0.0
  %67 = vmatpush1.msra.mxu0 0.0
  %68 = vmatprep.subr.mxu0 0.0
  %69 = vmatpush1.msra.mxu0 0.0
  %70 = vmatprep.subr.mxu0 0.0
  %71 = vmatpush1.msra.mxu0 0.0
  %72 = vmatprep.subr.mxu0 0.0
  %73 = vmatpush1.msra.mxu0 0.0
  %74 = vmatprep.subr.mxu0 0.0
  %75 = vmatpush1.msra.mxu0 0.0
  %76 = vmatprep.subr.mxu0 0.0
  %77 = vmatpush1.msra.mxu0 0.0
  %78 = vmatprep.subr.mxu0 0.0
  %79 = vmatpush1.msra.mxu0 0.0
  %80 = vmatprep.subr.mxu0 0.0
  %81 = vmatpush1.msra.mxu0 0.0
  %82 = vmatprep.subr.mxu0 0.0
  %83 = vmatpush1.msra.mxu0 0.0
  %84 = vmatprep.subr.mxu0 0.0
  %85 = vmatpush1.msra.mxu0 0.0
  %86 = vmatprep.subr.mxu0 0.0
  %87 = vmatpush1.msra.mxu0 0.0
  %88 = vmatprep.subr.mxu0 0.0
  %89 = vmatpush1.msra.mxu0 0.0
  %90 = vmatprep.subr.mxu0 0.0
  %91 = vmatpush1.msra.mxu0 0.0
  %92 = vmatprep.subr.mxu0 0.0
  %93 = vmatpush1.msra.mxu0 0.0
  %94 = vmatprep.subr.mxu0 0.0
  %95 = vmatpush1.msra.mxu0 0.0
  %96 = vmatprep.subr.mxu0 0.0
  %97 = vmatpush1.msra.mxu0 0.0
  %98 = vmatprep.subr.mxu0 0.0
  %99 = vmatpush1.msra.mxu0 0.0
  %100 = vmatprep.subr.mxu0 0.0
  %101 = vmatpush1.msra.mxu0 0.0
  %102 = vmatprep.subr.mxu0 0.0
  %103 = vmatpush1.msra.mxu0 0.0
  %104 = vmatprep.mubr.f32.mxu0 0.0
  %105 = vmatmul.mubr.f32.gmra.mrb[0].mxu0 %v31
  %v106 = vpop.f32.mrb[0].mxu0
  %v107 = vadd.f32 %v22, %v106
  %v108 = vpop.f32.mrb[0].mxu0
  %109 = vmatprep.mubr.f32.mxu0 0.0
  %110 = vmatmul.mubr.f32.gmra.mrb[0].mxu0 %v34
  %v111 = vpop.f32.mrb[0].mxu0
  %v112 = vadd.f32 %v27, %v111
  %v113 = vpop.f32.mrb[0].mxu0
  %114 = vdwg.mxu0
  %v115 = vmax.f32 %v107, 0.0
  %v116 = vmax.f32 %v112, 0.0
  %v117 = vld [vmem:[%s0 + $0x10] sm:$0xff]
  %v118 = vld [vmem:[%s0 + $0x18] sm:$0xff]
  %v119 = vld [vmem:[%s0 + $0x20] sm:$0xf]
  %v120 = vld [vmem:[%s1 + $0x10] sm:$0xff]
  %v121 = vld [vmem:[%s1 + $0x18] sm:$0xff]
  %v122 = vld [vmem:[%s1 + $0x20] sm:$0xf]
  %124 = vset.pattern.permute.xlu0 0
  %125 = vperm.xlu0 %124, %v120
  %v126 = vpop.permute.xlu0 %125
  %129 = vset.pattern.permute.xlu0 0
  %130 = vperm.xlu0 %129, %v121
  %v131 = vpop.permute.xlu0 %130
  %134 = vset.pattern.permute.xlu0 0
  %135 = vperm.xlu0 %134, %v122
  %v136 = vpop.permute.xlu0 %135
  %vm138 = vcmask 80896
  %v140 = vsel %vm138, %v117, 0
  %v143 = vsel %vm138, %v118, 0
  %v146 = vsel %vm138, %v119, 0
  %vm148 = vcmask 1041408
  %v150 = vsel %vm148, %v116, 0
  %152 = vmatprep.subr.mxu0 0.0
  %153 = vmatpush1.msra.mxu0 %v115
  %154 = vmatprep.subr.mxu0 0.0
  %155 = vmatpush1.msra.mxu0 %v150
  %156 = vmatprep.subr.mxu0 0.0
  %157 = vmatpush1.msra.mxu0 0.0
  %158 = vmatprep.subr.mxu0 0.0
  %159 = vmatpush1.msra.mxu0 0.0
  %160 = vmatprep.subr.mxu0 0.0
  %161 = vmatpush1.msra.mxu0 0.0
  %162 = vmatprep.subr.mxu0 0.0
  %163 = vmatpush1.msra.mxu0 0.0
  %164 = vmatprep.subr.mxu0 0.0
  %165 = vmatpush1.msra.mxu0 0.0
  %166 = vmatprep.subr.mxu0 0.0
  %167 = vmatpush1.msra.mxu0 0.0
  %168 = vmatprep.subr.mxu0 0.0
  %169 = vmatpush1.msra.mxu0 0.0
  %170 = vmatprep.subr.mxu0 0.0
  %171 = vmatpush1.msra.mxu0 0.0
  %172 = vmatprep.subr.mxu0 0.0
  %173 = vmatpush1.msra.mxu0 0.0
  %174 = vmatprep.subr.mxu0 0.0
  %175 = vmatpush1.msra.mxu0 0.0
  %176 = vmatprep.subr.mxu0 0.0
  %177 = vmatpush1.msra.mxu0 0.0
  %178 = vmatprep.subr.mxu0 0.0
  %179 = vmatpush1.msra.mxu0 0.0
  %180 = vmatprep.subr.mxu0 0.0
  %181 = vmatpush1.msra.mxu0 0.0
  %182 = vmatprep.subr.mxu0 0.0
  %183 = vmatpush1.msra.mxu0 0.0
  %184 = vmatprep.subr.mxu0 0.0
  %185 = vmatpush1.msra.mxu0 0.0
  %186 = vmatprep.subr.mxu0 0.0
  %187 = vmatpush1.msra.mxu0 0.0
  %188 = vmatprep.subr.mxu0 0.0
  %189 = vmatpush1.msra.mxu0 0.0
  %190 = vmatprep.subr.mxu0 0.0
  %191 = vmatpush1.msra.mxu0 0.0
  %192 = vmatprep.subr.mxu0 0.0
  %193 = vmatpush1.msra.mxu0 0.0
  %194 = vmatprep.subr.mxu0 0.0
  %195 = vmatpush1.msra.mxu0 0.0
  %196 = vmatprep.subr.mxu0 0.0
  %197 = vmatpush1.msra.mxu0 0.0
  %198 = vmatprep.subr.mxu0 0.0
  %199 = vmatpush1.msra.mxu0 0.0
  %200 = vmatprep.subr.mxu0 0.0
  %201 = vmatpush1.msra.mxu0 0.0
  %202 = vmatprep.subr.mxu0 0.0
  %203 = vmatpush1.msra.mxu0 0.0
  %204 = vmatprep.subr.mxu0 0.0
  %205 = vmatpush1.msra.mxu0 0.0
  %206 = vmatprep.subr.mxu0 0.0
  %207 = vmatpush1.msra.mxu0 0.0
  %208 = vmatprep.subr.mxu0 0.0
  %209 = vmatpush1.msra.mxu0 0.0
  %210 = vmatprep.subr.mxu0 0.0
  %211 = vmatpush1.msra.mxu0 0.0
  %212 = vmatprep.subr.mxu0 0.0
  %213 = vmatpush1.msra.mxu0 0.0
  %214 = vmatprep.subr.mxu0 0.0
  %215 = vmatpush1.msra.mxu0 0.0
  %216 = vmatprep.mubr.f32.mxu0 0.0
  %217 = vmatmul.mubr.f32.gmra.mrb[0].mxu0 %v140
  %v218 = vpop.f32.mrb[0].mxu0
  %v219 = vadd.f32 %v126, %v218
  %v220 = vpop.f32.mrb[0].mxu0
  %221 = vmatprep.mubr.f32.mxu0 0.0
  %222 = vmatmul.mubr.f32.gmra.mrb[0].mxu0 %v143
  %v223 = vpop.f32.mrb[0].mxu0
  %v224 = vadd.f32 %v131, %v223
  %v225 = vpop.f32.mrb[0].mxu0
  %226 = vmatprep.mubr.f32.mxu0 0.0
  %227 = vmatmul.mubr.f32.gmra.mrb[0].mxu0 %v146
  %v228 = vpop.f32.mrb[0].mxu0
  %v229 = vadd.f32 %v136, %v228
  %v230 = vpop.f32.mrb[0].mxu0
  %231 = vdwg.mxu0
  %v232 = vmax.f32 %v219, 0.0
  %v233 = vmax.f32 %v224, 0.0
  %v234 = vmax.f32 %v229, 0.0
  %v235 = vld [vmem:[%s0 + $0x28] sm:$0xff]
  %v236 = vld [vmem:[%s0 + $0x30] sm:$0x3]
  %v237 = vld [vmem:[%s1 + $0x28] sm:$0xff]
  %v238 = vld [vmem:[%s1 + $0x30] sm:$0x3]
  %240 = vset.pattern.permute.xlu0 0
  %241 = vperm.xlu0 %240, %v237
  %v242 = vpop.permute.xlu0 %241
  %245 = vset.pattern.permute.xlu0 0
  %246 = vperm.xlu0 %245, %v238
  %v247 = vpop.permute.xlu0 %246
  %vm249 = vcmask 162816
  %v251 = vsel %vm249, %v235, 0
  %v254 = vsel %vm249, %v236, 0
  %v257 = vsel %vm36, %v234, 0
  %259 = vmatprep.subr.mxu0 0.0
  %260 = vmatpush1.msra.mxu0 %v232
  %261 = vmatprep.subr.mxu0 0.0
  %262 = vmatpush1.msra.mxu0 %v233
  %263 = vmatprep.subr.mxu0 0.0
  %264 = vmatpush1.msra.mxu0 %v257
  %265 = vmatprep.subr.mxu0 0.0
  %266 = vmatpush1.msra.mxu0 0.0
  %267 = vmatprep.subr.mxu0 0.0
  %268 = vmatpush1.msra.mxu0 0.0
  %269 = vmatprep.subr.mxu0 0.0
  %270 = vmatpush1.msra.mxu0 0.0
  %271 = vmatprep.subr.mxu0 0.0
  %272 = vmatpush1.msra.mxu0 0.0
  %273 = vmatprep.subr.mxu0 0.0
  %274 = vmatpush1.msra.mxu0 0.0
  %275 = vmatprep.subr.mxu0 0.0
  %276 = vmatpush1.msra.mxu0 0.0
  %277 = vmatprep.subr.mxu0 0.0
  %278 = vmatpush1.msra.mxu0 0.0
  %279 = vmatprep.subr.mxu0 0.0
  %280 = vmatpush1.msra.mxu0 0.0
  %281 = vmatprep.subr.mxu0 0.0
  %282 = vmatpush1.msra.mxu0 0.0
  %283 = vmatprep.subr.mxu0 0.0
  %284 = vmatpush1.msra.mxu0 0.0
  %285 = vmatprep.subr.mxu0 0.0
  %286 = vmatpush1.msra.mxu0 0.0
  %287 = vmatprep.subr.mxu0 0.0
  %288 = vmatpush1.msra.mxu0 0.0
  %289 = vmatprep.subr.mxu0 0.0
  %290 = vmatpush1.msra.mxu0 0.0
  %291 = vmatprep.subr.mxu0 0.0
  %292 = vmatpush1.msra.mxu0 0.0
  %293 = vmatprep.subr.mxu0 0.0
  %294 = vmatpush1.msra.mxu0 0.0
  %295 = vmatprep.subr.mxu0 0.0
  %296 = vmatpush1.msra.mxu0 0.0
  %297 = vmatprep.subr.mxu0 0.0
  %298 = vmatpush1.msra.mxu0 0.0
  %299 = vmatprep.subr.mxu0 0.0
  %300 = vmatpush1.msra.mxu0 0.0
  %301 = vmatprep.subr.mxu0 0.0
  %302 = vmatpush1.msra.mxu0 0.0
  %303 = vmatprep.subr.mxu0 0.0
  %304 = vmatpush1.msra.mxu0 0.0
  %305 = vmatprep.subr.mxu0 0.0
  %306 = vmatpush1.msra.mxu0 0.0
  %307 = vmatprep.subr.mxu0 0.0
  %308 = vmatpush1.msra.mxu0 0.0
  %309 = vmatprep.subr.mxu0 0.0
  %310 = vmatpush1.msra.mxu0 0.0
  %311 = vmatprep.subr.mxu0 0.0
  %312 = vmatpush1.msra.mxu0 0.0
  %313 = vmatprep.subr.mxu0 0.0
  %314 = vmatpush1.msra.mxu0 0.0
  %315 = vmatprep.subr.mxu0 0.0
  %316 = vmatpush1.msra.mxu0 0.0
  %317 = vmatprep.subr.mxu0 0.0
  %318 = vmatpush1.msra.mxu0 0.0
  %319 = vmatprep.subr.mxu0 0.0
  %320 = vmatpush1.msra.mxu0 0.0
  %321 = vmatprep.subr.mxu0 0.0
  %322 = vmatpush1.msra.mxu0 0.0
  %323 = vmatprep.mubr.f32.mxu0 0.0
  %324 = vmatmul.mubr.f32.gmra.mrb[0].mxu0 %v251
  %v325 = vpop.f32.mrb[0].mxu0
  %v326 = vadd.f32 %v242, %v325
  %v327 = vpop.f32.mrb[0].mxu0
  %328 = vmatprep.mubr.f32.mxu0 0.0
  %329 = vmatmul.mubr.f32.gmra.mrb[0].mxu0 %v254
  %v330 = vpop.f32.mrb[0].mxu0
  %v331 = vadd.f32 %v247, %v330
  %v332 = vpop.f32.mrb[0].mxu0
  %333 = vdwg.mxu0
  %v334 = vmax.f32 %v326, 0.0
  %v335 = vmax.f32 %v331, 0.0
  %v336 = vld [vmem:[%s0 + $0x38] sm:$0x1f]
  %v337 = vld [vmem:[%s1 + $0x38] sm:$0x1f]
  %339 = vset.pattern.permute.xlu0 0
  %340 = vperm.xlu0 %339, %v337
  %v341 = vpop.permute.xlu0 %340
  %v344 = vsel %vm138, %v336, 0
  %v347 = vsel %vm148, %v335, 0
  %349 = vmatprep.subr.mxu0 0.0
  %350 = vmatpush1.msra.mxu0 %v334
  %351 = vmatprep.subr.mxu0 0.0
  %352 = vmatpush1.msra.mxu0 %v347
  %353 = vmatprep.subr.mxu0 0.0
  %354 = vmatpush1.msra.mxu0 0.0
  %355 = vmatprep.subr.mxu0 0.0
  %356 = vmatpush1.msra.mxu0 0.0
  %357 = vmatprep.subr.mxu0 0.0
  %358 = vmatpush1.msra.mxu0 0.0
  %359 = vmatprep.subr.mxu0 0.0
  %360 = vmatpush1.msra.mxu0 0.0
  %361 = vmatprep.subr.mxu0 0.0
  %362 = vmatpush1.msra.mxu0 0.0
  %363 = vmatprep.subr.mxu0 0.0
  %364 = vmatpush1.msra.mxu0 0.0
  %365 = vmatprep.subr.mxu0 0.0
  %366 = vmatpush1.msra.mxu0 0.0
  %367 = vmatprep.subr.mxu0 0.0
  %368 = vmatpush1.msra.mxu0 0.0
  %369 = vmatprep.subr.mxu0 0.0
  %370 = vmatpush1.msra.mxu0 0.0
  %371 = vmatprep.subr.mxu0 0.0
  %372 = vmatpush1.msra.mxu0 0.0
  %373 = vmatprep.subr.mxu0 0.0
  %374 = vmatpush1.msra.mxu0 0.0
  %375 = vmatprep.subr.mxu0 0.0
  %376 = vmatpush1.msra.mxu0 0.0
  %377 = vmatprep.subr.mxu0 0.0
  %378 = vmatpush1.msra.mxu0 0.0
  %379 = vmatprep.subr.mxu0 0.0
  %380 = vmatpush1.msra.mxu0 0.0
  %381 = vmatprep.subr.mxu0 0.0
  %382 = vmatpush1.msra.mxu0 0.0
  %383 = vmatprep.subr.mxu0 0.0
  %384 = vmatpush1.msra.mxu0 0.0
  %385 = vmatprep.subr.mxu0 0.0
  %386 = vmatpush1.msra.mxu0 0.0
  %387 = vmatprep.subr.mxu0 0.0
  %388 = vmatpush1.msra.mxu0 0.0
  %389 = vmatprep.subr.mxu0 0.0
  %390 = vmatpush1.msra.mxu0 0.0
  %391 = vmatprep.subr.mxu0 0.0
  %392 = vmatpush1.msra.mxu0 0.0
  %393 = vmatprep.subr.mxu0 0.0
  %394 = vmatpush1.msra.mxu0 0.0
  %395 = vmatprep.subr.mxu0 0.0
  %396 = vmatpush1.msra.mxu0 0.0
  %397 = vmatprep.subr.mxu0 0.0
  %398 = vmatpush1.msra.mxu0 0.0
  %399 = vmatprep.subr.mxu0 0.0
  %400 = vmatpush1.msra.mxu0 0.0
  %401 = vmatprep.subr.mxu0 0.0
  %402 = vmatpush1.msra.mxu0 0.0
  %403 = vmatprep.subr.mxu0 0.0
  %404 = vmatpush1.msra.mxu0 0.0
  %405 = vmatprep.subr.mxu0 0.0
  %406 = vmatpush1.msra.mxu0 0.0
  %407 = vmatprep.subr.mxu0 0.0
  %408 = vmatpush1.msra.mxu0 0.0
  %409 = vmatprep.subr.mxu0 0.0
  %410 = vmatpush1.msra.mxu0 0.0
  %411 = vmatprep.subr.mxu0 0.0
  %412 = vmatpush1.msra.mxu0 0.0
  %413 = vmatprep.mubr.f32.mxu0 0.0
  %414 = vmatmul.mubr.f32.gmra.mrb[0].mxu0 %v344
  %v415 = vpop.f32.mrb[0].mxu0
  %v416 = vadd.f32 %v341, %v415
  %v417 = vpop.f32.mrb[0].mxu0
  %418 = vdwg.mxu0
  %v419 = vmax.f32 %v416, 0.0
  %v420 = vld [vmem:[%s0 + $0x40] sm:$0x1]
  %v421 = vld [vmem:[%s1 + $0x40] sm:$0x1]
  %423 = vset.pattern.permute.xlu0 0
  %424 = vperm.xlu0 %423, %v421
  %v425 = vpop.permute.xlu0 %424
  %vm427 = vcmask 39936
  %v429 = vsel %vm427, %v420, 0
  %vm431 = vcmask 1044480
  %v433 = vsel %vm431, %v419, 0
  %435 = vmatprep.subr.mxu0 0.0
  %436 = vmatpush1.msra.mxu0 %v433
  %437 = vmatprep.subr.mxu0 0.0
  %438 = vmatpush1.msra.mxu0 0.0
  %439 = vmatprep.subr.mxu0 0.0
  %440 = vmatpush1.msra.mxu0 0.0
  %441 = vmatprep.subr.mxu0 0.0
  %442 = vmatpush1.msra.mxu0 0.0
  %443 = vmatprep.subr.mxu0 0.0
  %444 = vmatpush1.msra.mxu0 0.0
  %445 = vmatprep.subr.mxu0 0.0
  %446 = vmatpush1.msra.mxu0 0.0
  %447 = vmatprep.subr.mxu0 0.0
  %448 = vmatpush1.msra.mxu0 0.0
  %449 = vmatprep.subr.mxu0 0.0
  %450 = vmatpush1.msra.mxu0 0.0
  %451 = vmatprep.subr.mxu0 0.0
  %452 = vmatpush1.msra.mxu0 0.0
  %453 = vmatprep.subr.mxu0 0.0
  %454 = vmatpush1.msra.mxu0 0.0
  %455 = vmatprep.subr.mxu0 0.0
  %456 = vmatpush1.msra.mxu0 0.0
  %457 = vmatprep.subr.mxu0 0.0
  %458 = vmatpush1.msra.mxu0 0.0
  %459 = vmatprep.subr.mxu0 0.0
  %460 = vmatpush1.msra.mxu0 0.0
  %461 = vmatprep.subr.mxu0 0.0
  %462 = vmatpush1.msra.mxu0 0.0
  %463 = vmatprep.subr.mxu0 0.0
  %464 = vmatpush1.msra.mxu0 0.0
  %465 = vmatprep.subr.mxu0 0.0
  %466 = vmatpush1.msra.mxu0 0.0
  %467 = vmatprep.subr.mxu0 0.0
  %468 = vmatpush1.msra.mxu0 0.0
  %469 = vmatprep.subr.mxu0 0.0
  %470 = vmatpush1.msra.mxu0 0.0
  %471 = vmatprep.subr.mxu0 0.0
  %472 = vmatpush1.msra.mxu0 0.0
  %473 = vmatprep.subr.mxu0 0.0
  %474 = vmatpush1.msra.mxu0 0.0
  %475 = vmatprep.subr.mxu0 0.0
  %476 = vmatpush1.msra.mxu0 0.0
  %477 = vmatprep.subr.mxu0 0.0
  %478 = vmatpush1.msra.mxu0 0.0
  %479 = vmatprep.subr.mxu0 0.0
  %480 = vmatpush1.msra.mxu0 0.0
  %481 = vmatprep.subr.mxu0 0.0
  %482 = vmatpush1.msra.mxu0 0.0
  %483 = vmatprep.subr.mxu0 0.0
  %484 = vmatpush1.msra.mxu0 0.0
  %485 = vmatprep.subr.mxu0 0.0
  %486 = vmatpush1.msra.mxu0 0.0
  %487 = vmatprep.subr.mxu0 0.0
  %488 = vmatpush1.msra.mxu0 0.0
  %489 = vmatprep.subr.mxu0 0.0
  %490 = vmatpush1.msra.mxu0 0.0
  %491 = vmatprep.subr.mxu0 0.0
  %492 = vmatpush1.msra.mxu0 0.0
  %493 = vmatprep.subr.mxu0 0.0
  %494 = vmatpush1.msra.mxu0 0.0
  %495 = vmatprep.subr.mxu0 0.0
  %496 = vmatpush1.msra.mxu0 0.0
  %497 = vmatprep.subr.mxu0 0.0
  %498 = vmatpush1.msra.mxu0 0.0
  %499 = vmatprep.mubr.f32.mxu0 0.0
  %500 = vmatmul.mubr.f32.gmra.mrb[0].mxu0 %v429
  %v501 = vpop.f32.mrb[0].mxu0
  %v502 = vadd.f32 %v425, %v501
  %v503 = vpop.f32.mrb[0].mxu0
  %504 = vdwg.mxu0
  %v505 = vsub.f32 0.0, %v502
  %v506 = vmul.f32 %v505, 1.442695
  %v507 = vpow.pop %v506
  %v508 = vadd.f32 %v507, 1.0
  %v509 = vrcp.pop %v508
  %v510 = vmax.f32 %v509, 0.0
  %v511 = vmin.f32 %v510, 1.0
  %512 = vst [vmem:[%s3] sm:$0x1] %v511
  // Predicated region
  $region14: #{policy_forward.1} parent=0 // pred_check
    _
  $region15: #{policy_forward.1} parent=0 // pred_check_branch
    %514 = sbr.rel (0) target = $region17
  $region16: #{policy_forward.1} parent=0 // pred_region
    _
  $region17: #{policy_forward.1} parent=0 // pred_fallthru
    _
  // Predicated region
  $region18: #{policy_forward.1} parent=0 // pred_check
    _
  $region19: #{policy_forward.1} parent=0 // pred_check_branch
    %516 = sbr.rel (0) target = $region21
  $region20: #{policy_forward.1} parent=0 // pred_region
    _
  $region21: #{policy_forward.1} parent=0 // pred_fallthru
    _

</llo_original>
